<compile_context>
chip_gen: v5e
topology: v5e:2x2
jax: 0.10.0
libtpu: 0.0.40
codegen_flags: <defaults>
</compile_context>

<pallas_src>
import jax
import jax.numpy as jnp
from jax.experimental import pallas as pl
from jax.experimental.pallas import tpu as pltpu

_TILE_ELEMS = 512 * 512          # ~1 MiB of f32 per stream per grid step
_VMEM_LIMIT = 48 * 1024 * 1024   # headroom, still < v7x physical 64 MiB


def _cdiv(a, b):
    return -(-a // b)


def _make_db_reduce_kernel(tr, L, PR, M):
    """Masked reductions over one (tr, L) row tile of the flattened maps.

    sums_ref has shape (8, PR, L); row-group k holds lane/sublane partials of:
      0: shrink * gt * mask             (dice intersection, shrink maps)
      1: shrink * mask
      2: gt * mask                      (positive.sum())
      3: (1 - gt) * mask                (negative.sum())
      4: |thresh - thr_gt| * thr_mask   (masked-L1 numerator)
      5: thr_mask
      6: binary * gt * mask             (dice intersection, binary maps)
      7: binary * mask
    """
    has_tail = (M % tr) != 0

    def kernel(pred_ref, tmap_ref, tmask_ref, smap_ref, smask_ref, sums_ref):
        i = pl.program_id(1)              # inner ("arbitrary") reduction axis

        shrink = pred_ref[0]              # (tr, L) channel views, zero-cost
        thresh = pred_ref[1]
        binary = pred_ref[2]
        tmap = tmap_ref[...]
        tmask = tmask_ref[...]
        smap = smap_ref[...]
        smask = smask_ref[...]

        if has_tail:
            # Ragged last tile: zero every stream in out-of-range rows so the
            # (unspecified) OOB block padding contributes nothing.
            row = jax.lax.broadcasted_iota(jnp.int32, (tr, L), 0)
            valid = row < (M - i * tr)
            z = jnp.float32(0)
            shrink = jnp.where(valid, shrink, z)
            thresh = jnp.where(valid, thresh, z)
            binary = jnp.where(valid, binary, z)
            tmap = jnp.where(valid, tmap, z)
            tmask = jnp.where(valid, tmask, z)
            smap = jnp.where(valid, smap, z)
            smask = jnp.where(valid, smask, z)

        gm = smap * smask                 # positive map: gt * mask
        neg = smask - gm                  # negative map: (1 - gt) * mask

        def psum(x):
            # (tr, L) -> (PR, L).  For PR == 8 this splits the sublane axis
            # exactly on the (8, 128) vreg tile boundary: pure full-vreg VPU
            # adds, no XLU intra-vreg reduction.
            if PR == 8:
                return jnp.sum(x.reshape(tr // 8, 8, L), axis=0)
            return jnp.sum(x, axis=0, keepdims=True)

        @pl.when(i == 0)
        def _():
            sums_ref[...] = jnp.zeros_like(sums_ref)

        sums_ref[0] += psum(shrink * gm)
        sums_ref[1] += psum(shrink * smask)
        sums_ref[2] += psum(gm)
        sums_ref[3] += psum(neg)
        sums_ref[4] += psum(jnp.abs(thresh - tmap) * tmask)
        sums_ref[5] += psum(tmask)
        sums_ref[6] += psum(binary * gm)
        sums_ref[7] += psum(binary * smask)

    return kernel


def db_loss(predicts, labels, *, alpha=5.0, beta=10.0, ohem_ratio=3.0,
            eps=1e-6):
    """JAX/Pallas implementation of DBLoss.forward.

    predicts: dict with 'maps' of shape (B, C>=3, H, W) (or the array itself);
              channels = [shrink, threshold, binary].
    labels:   sequence; labels[1:5] = (threshold_map, threshold_mask,
              shrink_map, shrink_mask), each (B, H, W).
    Note: shrink_map / shrink_mask are assumed binary (0/1), as produced by the
    DB label generator (required by the closed-form OHEM top-k below).
    """
    predict_maps = predicts['maps'] if isinstance(predicts, dict) else predicts
    (label_threshold_map, label_threshold_mask,
     label_shrink_map, label_shrink_mask) = labels[1:5]

    # Everything is consumed as f32; for f32 inputs these are no-ops (no extra
    # HBM cast pass — the previous bf16 label casts were a net loss).
    pred = jnp.asarray(predict_maps, jnp.float32)
    tmap = jnp.asarray(label_threshold_map, jnp.float32)
    tmask = jnp.asarray(label_threshold_mask, jnp.float32)
    smap = jnp.asarray(label_shrink_map, jnp.float32)
    smask = jnp.asarray(label_shrink_mask, jnp.float32)

    B, C, H, W = pred.shape
    HW = H * W

    # Lane-dense slab width: largest of {512, 256, 128} dividing H*W so every
    # (B, C, H, W) -> (B, C, M, L) view is a free reshape (no pad, no copy).
    L = next((l for l in (512, 256, 128) if HW % l == 0), None)
    if L is None:
        # TODO(synk): rare ragged spatial size — pay one pad pass; masks are
        # zero in the pad region so padded pixels contribute nothing.
        L = 128
        HWp = _cdiv(HW, L) * L
        padw = ((0, 0), (0, HWp - HW))
        pred = jnp.pad(pred.reshape(B, C, HW), ((0, 0),) + padw)
        tmap = jnp.pad(tmap.reshape(B, HW), padw)
        tmask = jnp.pad(tmask.reshape(B, HW), padw)
        smap = jnp.pad(smap.reshape(B, HW), padw)
        smask = jnp.pad(smask.reshape(B, HW), padw)
        HW = HWp

    M = HW // L
    # Rows per tile: ~1 MiB of f32 per stream per step; multiple of 8 whenever
    # the tile budget is the binding constraint.
    tr = min(max(_TILE_ELEMS // L, 8), M)
    PR = 8 if tr % 8 == 0 else 1
    steps = _cdiv(M, tr)

    pred4 = pred.reshape(B, C, M, L)      # free contiguous views
    tmap3 = tmap.reshape(B, M, L)
    tmask3 = tmask.reshape(B, M, L)
    smap3 = smap.reshape(B, M, L)
    smask3 = smask.reshape(B, M, L)

    # One block carries all three predicted channels (single strided DMA);
    # labels stream per-batch row tiles; accumulator slab is per-batch and
    # stays resident across the inner (reduction) grid axis.
    pred_spec = pl.BlockSpec((None, 3, tr, L), lambda b, i: (b, 0, i, 0))
    lab_spec = pl.BlockSpec((None, tr, L), lambda b, i: (b, i, 0))
    out_spec = pl.BlockSpec((None, 8, PR, L), lambda b, i: (b, 0, 0, 0))

    kernel = _make_db_reduce_kernel(tr, L, PR, M)

    elems = B * M * L
    cost = pl.CostEstimate(flops=int(22 * elems), transcendentals=0,
                           bytes_accessed=int(7 * elems * 4
                                              + 2 * B * 8 * PR * L * 4))

    sums = pl.pallas_call(
        kernel,
        out_shape=jax.ShapeDtypeStruct((B, 8, PR, L), jnp.float32),
        grid=(B, steps),
        in_specs=[pred_spec, lab_spec, lab_spec, lab_spec, lab_spec],
        out_specs=out_spec,
        compiler_params=pltpu.CompilerParams(
            # TODO(synk): on v7x, verify both TensorCores stream (consider
            # pltpu.CORE_PARALLEL / pl.core_map); "parallel" is the portable
            # megacore hint and a harmless no-op on single-TC v5e/v6e.
            dimension_semantics=("parallel", "arbitrary"),
            vmem_limit_bytes=_VMEM_LIMIT),
        cost_estimate=cost,
    )(pred4, tmap3, tmask3, smap3, smask3)

    # Collapse per-batch slabs + sublane/lane partials -> 8 scalars (tiny).
    s = jnp.sum(sums, axis=(0, 2, 3))
    (s_int_shr, s_pm_shr, s_gm, s_neg,
     s_l1, s_tmask, s_int_bin, s_pm_bin) = [s[k] for k in range(8)]

    # --- BalanceLoss(DiceLoss) on the shrink maps ----------------------------
    dice_shrink = 1.0 - 2.0 * s_int_shr / (s_pm_shr + s_gm + eps)

    # int() truncation of non-negative counts == floor
    pos_count = jnp.floor(s_gm)
    neg_count = jnp.floor(jnp.minimum(s_neg, pos_count * ohem_ratio))

    # positive_loss = positive * scalar_loss  =>  sum == positive.sum() * loss
    pos_loss_sum = s_gm * dice_shrink

    # Closed-form OHEM top-k: `negative` is a 0/1 map and the dice loss is a
    # single non-negative scalar, so the top `neg_count` entries of
    # negative * loss are all exactly dice_shrink (neg_count <= #ones).
    topk_neg_sum = neg_count * dice_shrink

    loss_shrink_maps = jnp.where(
        neg_count > 0,
        (pos_loss_sum + topk_neg_sum) / (pos_count + neg_count + eps),
        pos_loss_sum / (pos_count + eps))

    # --- MaskL1Loss on the threshold maps ------------------------------------
    loss_threshold_maps = s_l1 / (s_tmask + eps)

    # --- DiceLoss on the binary maps -----------------------------------------
    loss_binary_maps = 1.0 - 2.0 * s_int_bin / (s_pm_bin + s_gm + eps)

    loss_shrink_maps = alpha * loss_shrink_maps
    loss_threshold_maps = beta * loss_threshold_maps
    loss_all = loss_shrink_maps + loss_threshold_maps + loss_binary_maps
    return {
        'loss': loss_all,
        'loss_shrink_maps': loss_shrink_maps,
        'loss_threshold_maps': loss_threshold_maps,
        'loss_binary_maps': loss_binary_maps,
    }


if __name__ == "__main__":
    key = jax.random.PRNGKey(0)
    B, H, W = 2, 16, 16
    k1, k2, k3, k4, k5 = jax.random.split(key, 5)

    # predictions are probabilities in [0, 1] (DB head applies sigmoid)
    predict_maps = jax.nn.sigmoid(
        jax.random.normal(k1, (B, 3, H, W), jnp.float32))

    label_threshold_map = jax.random.uniform(k2, (B, H, W), dtype=jnp.float32)
    label_threshold_mask = (jax.random.uniform(k3, (B, H, W)) > 0.3).astype(jnp.float32)
    label_shrink_map = (jax.random.uniform(k4, (B, H, W)) > 0.5).astype(jnp.float32)
    label_shrink_mask = (jax.random.uniform(k5, (B, H, W)) > 0.2).astype(jnp.float32)

    labels = (None, label_threshold_map, label_threshold_mask,
              label_shrink_map, label_shrink_mask)

    losses = db_loss({'maps': predict_maps}, labels)
    jax.block_until_ready(losses)
    print("KERNEL_OK")
</pallas_src>

<mosaic_0001>
module attributes {stable_mosaic.version = 11 : i64} {
  func.func @kernel(%arg0: i32, %arg1: i32, %arg2: memref<1x3x1x256xf32, #tpu.memory_space<vmem>>, %arg3: memref<1x1x256xf32, #tpu.memory_space<vmem>>, %arg4: memref<1x1x256xf32, #tpu.memory_space<vmem>>, %arg5: memref<1x1x256xf32, #tpu.memory_space<vmem>>, %arg6: memref<1x1x256xf32, #tpu.memory_space<vmem>>, %arg7: memref<1x8x1x256xf32, #tpu.memory_space<vmem>>) attributes {dimension_semantics = [#tpu.dimension_semantics<parallel>, #tpu.dimension_semantics<arbitrary>], iteration_bounds = array<i64: 2, 1>, scalar_prefetch = 0 : i64, scratch_operands = 0 : i64, tpu.core_type = #tpu.core_type<tc>, window_params = [{transform_indices = @transform_0, window_bounds = array<i64: 1, 3, 1, 256>}, {transform_indices = @transform_1, window_bounds = array<i64: 1, 1, 256>}, {transform_indices = @transform_2, window_bounds = array<i64: 1, 1, 256>}, {transform_indices = @transform_3, window_bounds = array<i64: 1, 1, 256>}, {transform_indices = @transform_4, window_bounds = array<i64: 1, 1, 256>}, {transform_indices = @transform_5, window_bounds = array<i64: 1, 8, 1, 256>}]} {
    %c0 = arith.constant 0 : index
    %c0_0 = arith.constant 0 : index
    %c0_1 = arith.constant 0 : index
    %c0_2 = arith.constant 0 : index
    %0 = vector.load %arg2[%c0, %c0_0, %c0_1, %c0_2] : memref<1x3x1x256xf32, #tpu.memory_space<vmem>>, vector<1x1x1x256xf32>
    %1 = vector.shape_cast %0 : vector<1x1x1x256xf32> to vector<1x256xf32>
    %c0_3 = arith.constant 0 : index
    %c1 = arith.constant 1 : index
    %c0_4 = arith.constant 0 : index
    %c0_5 = arith.constant 0 : index
    %2 = vector.load %arg2[%c0_3, %c1, %c0_4, %c0_5] : memref<1x3x1x256xf32, #tpu.memory_space<vmem>>, vector<1x1x1x256xf32>
    %3 = vector.shape_cast %2 : vector<1x1x1x256xf32> to vector<1x256xf32>
    %c0_6 = arith.constant 0 : index
    %c2 = arith.constant 2 : index
    %c0_7 = arith.constant 0 : index
    %c0_8 = arith.constant 0 : index
    %4 = vector.load %arg2[%c0_6, %c2, %c0_7, %c0_8] : memref<1x3x1x256xf32, #tpu.memory_space<vmem>>, vector<1x1x1x256xf32>
    %5 = vector.shape_cast %4 : vector<1x1x1x256xf32> to vector<1x256xf32>
    %c0_9 = arith.constant 0 : index
    %c0_10 = arith.constant 0 : index
    %c0_11 = arith.constant 0 : index
    %6 = vector.load %arg3[%c0_9, %c0_10, %c0_11] : memref<1x1x256xf32, #tpu.memory_space<vmem>>, vector<1x1x256xf32>
    %7 = vector.shape_cast %6 : vector<1x1x256xf32> to vector<1x256xf32>
    %c0_12 = arith.constant 0 : index
    %c0_13 = arith.constant 0 : index
    %c0_14 = arith.constant 0 : index
    %8 = vector.load %arg4[%c0_12, %c0_13, %c0_14] : memref<1x1x256xf32, #tpu.memory_space<vmem>>, vector<1x1x256xf32>
    %9 = vector.shape_cast %8 : vector<1x1x256xf32> to vector<1x256xf32>
    %c0_15 = arith.constant 0 : index
    %c0_16 = arith.constant 0 : index
    %c0_17 = arith.constant 0 : index
    %10 = vector.load %arg5[%c0_15, %c0_16, %c0_17] : memref<1x1x256xf32, #tpu.memory_space<vmem>>, vector<1x1x256xf32>
    %11 = vector.shape_cast %10 : vector<1x1x256xf32> to vector<1x256xf32>
    %c0_18 = arith.constant 0 : index
    %c0_19 = arith.constant 0 : index
    %c0_20 = arith.constant 0 : index
    %12 = vector.load %arg6[%c0_18, %c0_19, %c0_20] : memref<1x1x256xf32, #tpu.memory_space<vmem>>, vector<1x1x256xf32>
    %13 = vector.shape_cast %12 : vector<1x1x256xf32> to vector<1x256xf32>
    %14 = arith.mulf %11, %13 : vector<1x256xf32>
    %15 = arith.subf %13, %14 : vector<1x256xf32>
    %c0_i32 = arith.constant 0 : i32
    %16 = arith.cmpi eq, %arg1, %c0_i32 : i32
    %17 = arith.extui %16 : i1 to i32
    %c0_i32_21 = arith.constant 0 : i32
    %18 = arith.cmpi ne, %17, %c0_i32_21 : i32
    scf.if %18 {
      %cst_88 = arith.constant 0.000000e+00 : f32
      %90 = vector.broadcast %cst_88 : f32 to vector<8x1x256xf32>
      %c0_89 = arith.constant 0 : index
      %c0_90 = arith.constant 0 : index
      %c0_91 = arith.constant 0 : index
      %c0_92 = arith.constant 0 : index
      %91 = vector.load %arg7[%c0_89, %c0_90, %c0_91, %c0_92] : memref<1x8x1x256xf32, #tpu.memory_space<vmem>>, vector<1x8x1x256xf32>
      %92 = vector.shape_cast %91 : vector<1x8x1x256xf32> to vector<8x1x256xf32>
      %93 = vector.shape_cast %90 : vector<8x1x256xf32> to vector<1x8x1x256xf32>
      tpu.vector_store %arg7[%c0_89, %c0_90, %c0_91, %c0_92], %93 {strides = array<i32>} : memref<1x8x1x256xf32, #tpu.memory_space<vmem>>, vector<1x8x1x256xf32>,
    } else {
    }
    %c0_22 = arith.constant 0 : index
    %c0_23 = arith.constant 0 : index
    %c0_24 = arith.constant 0 : index
    %c0_25 = arith.constant 0 : index
    %19 = vector.load %arg7[%c0_22, %c0_23, %c0_24, %c0_25] : memref<1x8x1x256xf32, #tpu.memory_space<vmem>>, vector<1x1x1x256xf32>
    %20 = vector.shape_cast %19 : vector<1x1x1x256xf32> to vector<1x256xf32>
    %21 = arith.mulf %1, %14 : vector<1x256xf32>
    %cst = arith.constant dense<0.000000e+00> : vector<256xf32>
    %22 = vector.multi_reduction <add>, %21, %cst [0] : vector<1x256xf32> to vector<256xf32>
    %23 = vector.shape_cast %22 : vector<256xf32> to vector<1x256xf32>
    %24 = arith.addf %20, %23 : vector<1x256xf32>
    %c0_26 = arith.constant 0 : index
    %c0_27 = arith.constant 0 : index
    %c0_28 = arith.constant 0 : index
    %c0_29 = arith.constant 0 : index
    %25 = vector.load %arg7[%c0_26, %c0_27, %c0_28, %c0_29] : memref<1x8x1x256xf32, #tpu.memory_space<vmem>>, vector<1x1x1x256xf32>
    %26 = vector.shape_cast %25 : vector<1x1x1x256xf32> to vector<1x256xf32>
    %27 = vector.shape_cast %24 : vector<1x256xf32> to vector<1x1x1x256xf32>
    tpu.vector_store %arg7[%c0_26, %c0_27, %c0_28, %c0_29], %27 {strides = array<i32>} : memref<1x8x1x256xf32, #tpu.memory_space<vmem>>, vector<1x1x1x256xf32>,
    %c0_30 = arith.constant 0 : index
    %c1_31 = arith.constant 1 : index
    %c0_32 = arith.constant 0 : index
    %c0_33 = arith.constant 0 : index
    %28 = vector.load %arg7[%c0_30, %c1_31, %c0_32, %c0_33] : memref<1x8x1x256xf32, #tpu.memory_space<vmem>>, vector<1x1x1x256xf32>
    %29 = vector.shape_cast %28 : vector<1x1x1x256xf32> to vector<1x256xf32>
    %30 = arith.mulf %1, %13 : vector<1x256xf32>
    %cst_34 = arith.constant dense<0.000000e+00> : vector<256xf32>
    %31 = vector.multi_reduction <add>, %30, %cst_34 [0] : vector<1x256xf32> to vector<256xf32>
    %32 = vector.shape_cast %31 : vector<256xf32> to vector<1x256xf32>
    %33 = arith.addf %29, %32 : vector<1x256xf32>
    %c0_35 = arith.constant 0 : index
    %c1_36 = arith.constant 1 : index
    %c0_37 = arith.constant 0 : index
    %c0_38 = arith.constant 0 : index
    %34 = vector.load %arg7[%c0_35, %c1_36, %c0_37, %c0_38] : memref<1x8x1x256xf32, #tpu.memory_space<vmem>>, vector<1x1x1x256xf32>
    %35 = vector.shape_cast %34 : vector<1x1x1x256xf32> to vector<1x256xf32>
    %36 = vector.shape_cast %33 : vector<1x256xf32> to vector<1x1x1x256xf32>
    tpu.vector_store %arg7[%c0_35, %c1_36, %c0_37, %c0_38], %36 {strides = array<i32>} : memref<1x8x1x256xf32, #tpu.memory_space<vmem>>, vector<1x1x1x256xf32>,
    %c0_39 = arith.constant 0 : index
    %c2_40 = arith.constant 2 : index
    %c0_41 = arith.constant 0 : index
    %c0_42 = arith.constant 0 : index
    %37 = vector.load %arg7[%c0_39, %c2_40, %c0_41, %c0_42] : memref<1x8x1x256xf32, #tpu.memory_space<vmem>>, vector<1x1x1x256xf32>
    %38 = vector.shape_cast %37 : vector<1x1x1x256xf32> to vector<1x256xf32>
    %cst_43 = arith.constant dense<0.000000e+00> : vector<256xf32>
    %39 = vector.multi_reduction <add>, %14, %cst_43 [0] : vector<1x256xf32> to vector<256xf32>
    %40 = vector.shape_cast %39 : vector<256xf32> to vector<1x256xf32>
    %41 = arith.addf %38, %40 : vector<1x256xf32>
    %c0_44 = arith.constant 0 : index
    %c2_45 = arith.constant 2 : index
    %c0_46 = arith.constant 0 : index
    %c0_47 = arith.constant 0 : index
    %42 = vector.load %arg7[%c0_44, %c2_45, %c0_46, %c0_47] : memref<1x8x1x256xf32, #tpu.memory_space<vmem>>, vector<1x1x1x256xf32>
    %43 = vector.shape_cast %42 : vector<1x1x1x256xf32> to vector<1x256xf32>
    %44 = vector.shape_cast %41 : vector<1x256xf32> to vector<1x1x1x256xf32>
    tpu.vector_store %arg7[%c0_44, %c2_45, %c0_46, %c0_47], %44 {strides = array<i32>} : memref<1x8x1x256xf32, #tpu.memory_space<vmem>>, vector<1x1x1x256xf32>,
    %c0_48 = arith.constant 0 : index
    %c3 = arith.constant 3 : index
    %c0_49 = arith.constant 0 : index
    %c0_50 = arith.constant 0 : index
    %45 = vector.load %arg7[%c0_48, %c3, %c0_49, %c0_50] : memref<1x8x1x256xf32, #tpu.memory_space<vmem>>, vector<1x1x1x256xf32>
    %46 = vector.shape_cast %45 : vector<1x1x1x256xf32> to vector<1x256xf32>
    %cst_51 = arith.constant dense<0.000000e+00> : vector<256xf32>
    %47 = vector.multi_reduction <add>, %15, %cst_51 [0] : vector<1x256xf32> to vector<256xf32>
    %48 = vector.shape_cast %47 : vector<256xf32> to vector<1x256xf32>
    %49 = arith.addf %46, %48 : vector<1x256xf32>
    %c0_52 = arith.constant 0 : index
    %c3_53 = arith.constant 3 : index
    %c0_54 = arith.constant 0 : index
    %c0_55 = arith.constant 0 : index
    %50 = vector.load %arg7[%c0_52, %c3_53, %c0_54, %c0_55] : memref<1x8x1x256xf32, #tpu.memory_space<vmem>>, vector<1x1x1x256xf32>
    %51 = vector.shape_cast %50 : vector<1x1x1x256xf32> to vector<1x256xf32>
    %52 = vector.shape_cast %49 : vector<1x256xf32> to vector<1x1x1x256xf32>
    tpu.vector_store %arg7[%c0_52, %c3_53, %c0_54, %c0_55], %52 {strides = array<i32>} : memref<1x8x1x256xf32, #tpu.memory_space<vmem>>, vector<1x1x1x256xf32>,
    %c0_56 = arith.constant 0 : index
    %c4 = arith.constant 4 : index
    %c0_57 = arith.constant 0 : index
    %c0_58 = arith.constant 0 : index
    %53 = vector.load %arg7[%c0_56, %c4, %c0_57, %c0_58] : memref<1x8x1x256xf32, #tpu.memory_space<vmem>>, vector<1x1x1x256xf32>
    %54 = vector.shape_cast %53 : vector<1x1x1x256xf32> to vector<1x256xf32>
    %55 = arith.subf %3, %7 : vector<1x256xf32>
    %56 = math.absf %55 : vector<1x256xf32>
    %57 = arith.mulf %56, %9 : vector<1x256xf32>
    %cst_59 = arith.constant dense<0.000000e+00> : vector<256xf32>
    %58 = vector.multi_reduction <add>, %57, %cst_59 [0] : vector<1x256xf32> to vector<256xf32>
    %59 = vector.shape_cast %58 : vector<256xf32> to vector<1x256xf32>
    %60 = arith.addf %54, %59 : vector<1x256xf32>
    %c0_60 = arith.constant 0 : index
    %c4_61 = arith.constant 4 : index
    %c0_62 = arith.constant 0 : index
    %c0_63 = arith.constant 0 : index
    %61 = vector.load %arg7[%c0_60, %c4_61, %c0_62, %c0_63] : memref<1x8x1x256xf32, #tpu.memory_space<vmem>>, vector<1x1x1x256xf32>
    %62 = vector.shape_cast %61 : vector<1x1x1x256xf32> to vector<1x256xf32>
    %63 = vector.shape_cast %60 : vector<1x256xf32> to vector<1x1x1x256xf32>
    tpu.vector_store %arg7[%c0_60, %c4_61, %c0_62, %c0_63], %63 {strides = array<i32>} : memref<1x8x1x256xf32, #tpu.memory_space<vmem>>, vector<1x1x1x256xf32>,
    %c0_64 = arith.constant 0 : index
    %c5 = arith.constant 5 : index
    %c0_65 = arith.constant 0 : index
    %c0_66 = arith.constant 0 : index
    %64 = vector.load %arg7[%c0_64, %c5, %c0_65, %c0_66] : memref<1x8x1x256xf32, #tpu.memory_space<vmem>>, vector<1x1x1x256xf32>
    %65 = vector.shape_cast %64 : vector<1x1x1x256xf32> to vector<1x256xf32>
    %cst_67 = arith.constant dense<0.000000e+00> : vector<256xf32>
    %66 = vector.multi_reduction <add>, %9, %cst_67 [0] : vector<1x256xf32> to vector<256xf32>
    %67 = vector.shape_cast %66 : vector<256xf32> to vector<1x256xf32>
    %68 = arith.addf %65, %67 : vector<1x256xf32>
    %c0_68 = arith.constant 0 : index
    %c5_69 = arith.constant 5 : index
    %c0_70 = arith.constant 0 : index
    %c0_71 = arith.constant 0 : index
    %69 = vector.load %arg7[%c0_68, %c5_69, %c0_70, %c0_71] : memref<1x8x1x256xf32, #tpu.memory_space<vmem>>, vector<1x1x1x256xf32>
    %70 = vector.shape_cast %69 : vector<1x1x1x256xf32> to vector<1x256xf32>
    %71 = vector.shape_cast %68 : vector<1x256xf32> to vector<1x1x1x256xf32>
    tpu.vector_store %arg7[%c0_68, %c5_69, %c0_70, %c0_71], %71 {strides = array<i32>} : memref<1x8x1x256xf32, #tpu.memory_space<vmem>>, vector<1x1x1x256xf32>,
    %c0_72 = arith.constant 0 : index
    %c6 = arith.constant 6 : index
    %c0_73 = arith.constant 0 : index
    %c0_74 = arith.constant 0 : index
    %72 = vector.load %arg7[%c0_72, %c6, %c0_73, %c0_74] : memref<1x8x1x256xf32, #tpu.memory_space<vmem>>, vector<1x1x1x256xf32>
    %73 = vector.shape_cast %72 : vector<1x1x1x256xf32> to vector<1x256xf32>
    %74 = arith.mulf %5, %14 : vector<1x256xf32>
    %cst_75 = arith.constant dense<0.000000e+00> : vector<256xf32>
    %75 = vector.multi_reduction <add>, %74, %cst_75 [0] : vector<1x256xf32> to vector<256xf32>
    %76 = vector.shape_cast %75 : vector<256xf32> to vector<1x256xf32>
    %77 = arith.addf %73, %76 : vector<1x256xf32>
    %c0_76 = arith.constant 0 : index
    %c6_77 = arith.constant 6 : index
    %c0_78 = arith.constant 0 : index
    %c0_79 = arith.constant 0 : index
    %78 = vector.load %arg7[%c0_76, %c6_77, %c0_78, %c0_79] : memref<1x8x1x256xf32, #tpu.memory_space<vmem>>, vector<1x1x1x256xf32>
    %79 = vector.shape_cast %78 : vector<1x1x1x256xf32> to vector<1x256xf32>
    %80 = vector.shape_cast %77 : vector<1x256xf32> to vector<1x1x1x256xf32>
    tpu.vector_store %arg7[%c0_76, %c6_77, %c0_78, %c0_79], %80 {strides = array<i32>} : memref<1x8x1x256xf32, #tpu.memory_space<vmem>>, vector<1x1x1x256xf32>,
    %c0_80 = arith.constant 0 : index
    %c7 = arith.constant 7 : index
    %c0_81 = arith.constant 0 : index
    %c0_82 = arith.constant 0 : index
    %81 = vector.load %arg7[%c0_80, %c7, %c0_81, %c0_82] : memref<1x8x1x256xf32, #tpu.memory_space<vmem>>, vector<1x1x1x256xf32>
    %82 = vector.shape_cast %81 : vector<1x1x1x256xf32> to vector<1x256xf32>
    %83 = arith.mulf %5, %13 : vector<1x256xf32>
    %cst_83 = arith.constant dense<0.000000e+00> : vector<256xf32>
    %84 = vector.multi_reduction <add>, %83, %cst_83 [0] : vector<1x256xf32> to vector<256xf32>
    %85 = vector.shape_cast %84 : vector<256xf32> to vector<1x256xf32>
    %86 = arith.addf %82, %85 : vector<1x256xf32>
    %c0_84 = arith.constant 0 : index
    %c7_85 = arith.constant 7 : index
    %c0_86 = arith.constant 0 : index
    %c0_87 = arith.constant 0 : index
    %87 = vector.load %arg7[%c0_84, %c7_85, %c0_86, %c0_87] : memref<1x8x1x256xf32, #tpu.memory_space<vmem>>, vector<1x1x1x256xf32>
    %88 = vector.shape_cast %87 : vector<1x1x1x256xf32> to vector<1x256xf32>
    %89 = vector.shape_cast %86 : vector<1x256xf32> to vector<1x1x1x256xf32>
    tpu.vector_store %arg7[%c0_84, %c7_85, %c0_86, %c0_87], %89 {strides = array<i32>} : memref<1x8x1x256xf32, #tpu.memory_space<vmem>>, vector<1x1x1x256xf32>,
    return
  }
  func.func @transform_0(%arg0: i32, %arg1: i32) -> (i32, i32, i32, i32) {
    %c0_i32 = arith.constant 0 : i32
    %c0_i32_0 = arith.constant 0 : i32
    %c0_i32_1 = arith.constant 0 : i32
    return %arg0, %c0_i32, %arg1, %c0_i32_0 : i32, i32, i32, i32
  }
  func.func @transform_1(%arg0: i32, %arg1: i32) -> (i32, i32, i32) {
    %c0_i32 = arith.constant 0 : i32
    %c0_i32_0 = arith.constant 0 : i32
    return %arg0, %arg1, %c0_i32 : i32, i32, i32
  }
  func.func @transform_2(%arg0: i32, %arg1: i32) -> (i32, i32, i32) {
    %c0_i32 = arith.constant 0 : i32
    %c0_i32_0 = arith.constant 0 : i32
    return %arg0, %arg1, %c0_i32 : i32, i32, i32
  }
  func.func @transform_3(%arg0: i32, %arg1: i32) -> (i32, i32, i32) {
    %c0_i32 = arith.constant 0 : i32
    %c0_i32_0 = arith.constant 0 : i32
    return %arg0, %arg1, %c0_i32 : i32, i32, i32
  }
  func.func @transform_4(%arg0: i32, %arg1: i32) -> (i32, i32, i32) {
    %c0_i32 = arith.constant 0 : i32
    %c0_i32_0 = arith.constant 0 : i32
    return %arg0, %arg1, %c0_i32 : i32, i32, i32
  }
  func.func @transform_5(%arg0: i32, %arg1: i32) -> (i32, i32, i32, i32) {
    %c0_i32 = arith.constant 0 : i32
    %c0_i32_0 = arith.constant 0 : i32
    %c0_i32_1 = arith.constant 0 : i32
    %c0_i32_2 = arith.constant 0 : i32
    return %arg0, %c0_i32, %c0_i32_0, %c0_i32_1 : i32, i32, i32, i32
  }
}

</mosaic_0001>

<llo_original>
// kernel: tpu_custom_call.1
$region0: #{tpu_custom_call.1}
  #allocation0 [shape = 'u32[]', space=smem, size = 0x4, offset = 0x4, fixed_abs, tag = 'smem constant byte address 0x4 - core index']
  #allocation1 [shape = 'u32[72,128]{1,0:T(1,128)}', space=vmem, size = 0x9000, scoped, tag = 'internal scratch']
  %s0 = inlined_call_operand.hbm [shape: f32[2,3,1,256], index: 0, kind: input, shape index: {}]
  %s1 = inlined_call_operand.hbm [shape: f32[2,1,256], index: 1, kind: input, shape index: {}]
  %s2 = inlined_call_operand.hbm [shape: f32[2,1,256], index: 2, kind: input, shape index: {}]
  %s3 = inlined_call_operand.hbm [shape: f32[2,1,256], index: 3, kind: input, shape index: {}]
  %s4 = inlined_call_operand.hbm [shape: f32[2,1,256], index: 4, kind: input, shape index: {}]
  %s5 = inlined_call_operand.hbm [shape: f32[2,8,1,256], index: 5, kind: output, shape index: {}]
  %s6 = sld [smem:[#allocation0]]
  $region77: #{tpu_custom_call.1} parent=0
    _
  %s8 = ssub.s32 1, %s6
  %s9 = scalar_select 0, %s8, %s6
  $region1: #{tpu_custom_call.1} parent=0
    #allocation2 [shape = 'u8[6144]{0}', space=vmem, size = 0x1800, scoped, tag = 'input window, operand 0']
    #allocation3 [shape = 's32[2]{0}', space=sflag, size = 0x8, scoped, tag = 'scoped memory for tpu_custom_call.1']
    #allocation4 [shape = 's32[2]{0}', space=sflag, size = 0x8, scoped, tag = 'scoped memory for tpu_custom_call.1']
    #allocation5 [shape = 'u8[2048]{0}', space=vmem, size = 0x800, scoped, tag = 'input window, operand 1']
    #allocation6 [shape = 's32[2]{0}', space=sflag, size = 0x8, scoped, tag = 'scoped memory for tpu_custom_call.1']
    #allocation7 [shape = 'u8[2048]{0}', space=vmem, size = 0x800, scoped, tag = 'input window, operand 2']
    #allocation8 [shape = 'u8[2048]{0}', space=vmem, size = 0x800, scoped, tag = 'input window, operand 3']
    #allocation9 [shape = 's32[2]{0}', space=sflag, size = 0x8, scoped, tag = 'scoped memory for tpu_custom_call.1']
    #allocation10 [shape = 'u8[2048]{0}', space=vmem, size = 0x800, scoped, tag = 'input window, operand 4']
    #allocation11 [shape = 'u8[16384]{0}', space=vmem, size = 0x4000, scoped, tag = 'output window, operand 0']
    %10 = vsyncpa [#allocation3], 0
    %s11 = scalar_lea.sflag [#allocation3], 1
    %12 = vsyncpa %s11, 0
    %13 = vsyncpa [#allocation6], 0
    %s14 = scalar_lea.sflag [#allocation6], 1
    %15 = vsyncpa %s14, 0
    %16 = vsyncpa [#allocation9], 0
    %s17 = scalar_lea.sflag [#allocation9], 1
    %18 = vsyncpa %s17, 0
    %19 = vsyncpa [#allocation4], 0
    %s20 = scalar_lea.sflag [#allocation4], 1
    %21 = vsyncpa %s20, 0
    loop: start=0, step=1, limit=4
    $region2: #{tpu_custom_call.1} parent=1 // loop_pre_header
      _
    $region3: #{tpu_custom_call.1} parent=1 // loop_header
      %s23 = sphi 0, %s27
      %p24 = scmp.ge.s32.totalorder %s23, 4
      %s30 = sphi 0, %s42
      %s31 = sphi 0, %s38
      %s32 = sphi 0, %s30
      %s33 = sphi 0, %s31
      %s34 = sphi 0, %s32
      %s35 = sphi 0, %s33
      %s47 = sphi 0, %s49
      %s50 = sphi 0, %s47
      %s51 = sphi 0, %s50
      %s67 = sphi 0, %s51
      %s75 = sphi 0, %s77
      %s78 = sphi 0, %s75
      %s79 = sphi 0, %s78
      %s95 = sphi 0, %s79
      %s103 = sphi 0, %s105
      %s106 = sphi 0, %s103
      %s107 = sphi 0, %s106
      %s123 = sphi 0, %s107
      %s131 = sphi 0, %s133
      %s134 = sphi 0, %s131
      %s135 = sphi 0, %s134
      %s151 = sphi 0, %s135
      %s159 = sphi 0, %s161
      %s162 = sphi 0, %s159
      %s163 = sphi 0, %s162
      %s179 = sphi 0, %s163
      %s185 = sphi 0, %s187
      %s188 = sphi 0, %s185
      %s189 = sphi 0, %s188
      %s205 = sphi 0, %s189
    $region4: #{tpu_custom_call.1} parent=1 // loop_header_branch
      %26 = sbr.rel (%p24) target = $region8
    $region5: #{tpu_custom_call.1} parent=1 // loop_body
      %s28 = ssub.s32 %s23, 1
      %s29 = ssub.s32 %s23, 2
      %s36 = sadd.s32 1, %s31
      %p37 = scmp.ge.s32.totalorder %s36, 1
      %s38 = scalar_select %p37, 0, %s36
      %s39 = sadd.s32 1, %s30
      %s40 = scalar_select %p37, %s39, %s30
      %p41 = scmp.ge.s32.totalorder %s40, 2
      %s42 = scalar_select %p41, 0, %s40
      %s43 = ssub.s32 %s30, %s42
      %s44 = ssub.s32 %s31, %s38
      %s45 = sor.u32 %s43, %s44
      %p46 = scmp.eq.s32.totalorder %s45, 0
      %s48 = sadd.s32 %s47, 1
      %s49 = scalar_select %p46, %s47, %s48
      %p52 = pneg %p46
      %p53 = scmp.eq.s32.totalorder %s23, 1
      %p54 = por %p52, %p53
      %p55 = scmp.ne.s32.totalorder %s47, %s50
      %p56 = scmp.eq.s32.totalorder %s23, 0
      %p57 = por %p55, %p56
      %p58 = scmp.ne.s32.totalorder %s47, %s50
      %p59 = scmp.eq.s32.totalorder %s28, 1
      %p60 = por %p58, %p59
      %p61 = scmp.ne.s32.totalorder %s50, %s51
      %p62 = scmp.eq.s32.totalorder %s28, 0
      %p63 = por %p61, %p62
      %p64 = scmp.ne.s32.totalorder %s50, %s51
      %p65 = scmp.eq.s32.totalorder %s29, 1
      %p66 = por %p64, %p65
      %p68 = scmp.ne.s32.totalorder %s51, %s67
      %p69 = scmp.eq.s32.totalorder %s29, 0
      %p70 = por %p68, %p69
      %s71 = ssub.s32 %s30, %s42
      %s72 = ssub.s32 %s31, %s38
      %s73 = sor.u32 %s71, %s72
      %p74 = scmp.eq.s32.totalorder %s73, 0
      %s76 = sadd.s32 %s75, 1
      %s77 = scalar_select %p74, %s75, %s76
      %p80 = pneg %p74
      %p81 = scmp.eq.s32.totalorder %s23, 1
      %p82 = por %p80, %p81
      %p83 = scmp.ne.s32.totalorder %s75, %s78
      %p84 = scmp.eq.s32.totalorder %s23, 0
      %p85 = por %p83, %p84
      %p86 = scmp.ne.s32.totalorder %s75, %s78
      %p87 = scmp.eq.s32.totalorder %s28, 1
      %p88 = por %p86, %p87
      %p89 = scmp.ne.s32.totalorder %s78, %s79
      %p90 = scmp.eq.s32.totalorder %s28, 0
      %p91 = por %p89, %p90
      %p92 = scmp.ne.s32.totalorder %s78, %s79
      %p93 = scmp.eq.s32.totalorder %s29, 1
      %p94 = por %p92, %p93
      %p96 = scmp.ne.s32.totalorder %s79, %s95
      %p97 = scmp.eq.s32.totalorder %s29, 0
      %p98 = por %p96, %p97
      %s99 = ssub.s32 %s30, %s42
      %s100 = ssub.s32 %s31, %s38
      %s101 = sor.u32 %s99, %s100
      %p102 = scmp.eq.s32.totalorder %s101, 0
      %s104 = sadd.s32 %s103, 1
      %s105 = scalar_select %p102, %s103, %s104
      %p108 = pneg %p102
      %p109 = scmp.eq.s32.totalorder %s23, 1
      %p110 = por %p108, %p109
      %p111 = scmp.ne.s32.totalorder %s103, %s106
      %p112 = scmp.eq.s32.totalorder %s23, 0
      %p113 = por %p111, %p112
      %p114 = scmp.ne.s32.totalorder %s103, %s106
      %p115 = scmp.eq.s32.totalorder %s28, 1
      %p116 = por %p114, %p115
      %p117 = scmp.ne.s32.totalorder %s106, %s107
      %p118 = scmp.eq.s32.totalorder %s28, 0
      %p119 = por %p117, %p118
      %p120 = scmp.ne.s32.totalorder %s106, %s107
      %p121 = scmp.eq.s32.totalorder %s29, 1
      %p122 = por %p120, %p121
      %p124 = scmp.ne.s32.totalorder %s107, %s123
      %p125 = scmp.eq.s32.totalorder %s29, 0
      %p126 = por %p124, %p125
      %s127 = ssub.s32 %s30, %s42
      %s128 = ssub.s32 %s31, %s38
      %s129 = sor.u32 %s127, %s128
      %p130 = scmp.eq.s32.totalorder %s129, 0
      %s132 = sadd.s32 %s131, 1
      %s133 = scalar_select %p130, %s131, %s132
      %p136 = pneg %p130
      %p137 = scmp.eq.s32.totalorder %s23, 1
      %p138 = por %p136, %p137
      %p139 = scmp.ne.s32.totalorder %s131, %s134
      %p140 = scmp.eq.s32.totalorder %s23, 0
      %p141 = por %p139, %p140
      %p142 = scmp.ne.s32.totalorder %s131, %s134
      %p143 = scmp.eq.s32.totalorder %s28, 1
      %p144 = por %p142, %p143
      %p145 = scmp.ne.s32.totalorder %s134, %s135
      %p146 = scmp.eq.s32.totalorder %s28, 0
      %p147 = por %p145, %p146
      %p148 = scmp.ne.s32.totalorder %s134, %s135
      %p149 = scmp.eq.s32.totalorder %s29, 1
      %p150 = por %p148, %p149
      %p152 = scmp.ne.s32.totalorder %s135, %s151
      %p153 = scmp.eq.s32.totalorder %s29, 0
      %p154 = por %p152, %p153
      %s155 = ssub.s32 %s30, %s42
      %s156 = ssub.s32 %s31, %s38
      %s157 = sor.u32 %s155, %s156
      %p158 = scmp.eq.s32.totalorder %s157, 0
      %s160 = sadd.s32 %s159, 1
      %s161 = scalar_select %p158, %s159, %s160
      %p164 = pneg %p158
      %p165 = scmp.eq.s32.totalorder %s23, 1
      %p166 = por %p164, %p165
      %p167 = scmp.ne.s32.totalorder %s159, %s162
      %p168 = scmp.eq.s32.totalorder %s23, 0
      %p169 = por %p167, %p168
      %p170 = scmp.ne.s32.totalorder %s159, %s162
      %p171 = scmp.eq.s32.totalorder %s28, 1
      %p172 = por %p170, %p171
      %p173 = scmp.ne.s32.totalorder %s162, %s163
      %p174 = scmp.eq.s32.totalorder %s28, 0
      %p175 = por %p173, %p174
      %p176 = scmp.ne.s32.totalorder %s162, %s163
      %p177 = scmp.eq.s32.totalorder %s29, 1
      %p178 = por %p176, %p177
      %p180 = scmp.ne.s32.totalorder %s163, %s179
      %p181 = scmp.eq.s32.totalorder %s29, 0
      %p182 = por %p180, %p181
      %s183 = ssub.s32 %s30, %s42
      %p184 = scmp.eq.s32.totalorder %s183, 0
      %s186 = sadd.s32 %s185, 1
      %s187 = scalar_select %p184, %s185, %s186
      %p190 = pneg %p184
      %p191 = scmp.eq.s32.totalorder %s23, 1
      %p192 = por %p190, %p191
      %p193 = scmp.ne.s32.totalorder %s185, %s188
      %p194 = scmp.eq.s32.totalorder %s23, 0
      %p195 = por %p193, %p194
      %p196 = scmp.ne.s32.totalorder %s185, %s188
      %p197 = scmp.eq.s32.totalorder %s28, 1
      %p198 = por %p196, %p197
      %p199 = scmp.ne.s32.totalorder %s188, %s189
      %p200 = scmp.eq.s32.totalorder %s28, 0
      %p201 = por %p199, %p200
      %p202 = scmp.ne.s32.totalorder %s188, %s189
      %p203 = scmp.eq.s32.totalorder %s29, 1
      %p204 = por %p202, %p203
      %p206 = scmp.ne.s32.totalorder %s189, %s205
      %p207 = scmp.eq.s32.totalorder %s29, 0
      %p208 = por %p206, %p207
      %p209 = scmp.le.s32.totalorder 1, %s23
      %p210 = scmp.lt.s32.totalorder %s23, 3
      %p211 = pnand %p209, %p210
      %p212 = pneg %p211
      // Predicated region
      $region9: #{tpu_custom_call.1} parent=5 // pred_check
        _
      $region10: #{tpu_custom_call.1} parent=5 // pred_check_branch
        %214 = sbr.rel (%p211) target = $region12
      $region11: #{tpu_custom_call.1} parent=5 // pred_region
        %s215 = ssub.s32 %s23, 1
      $region12: #{tpu_custom_call.1} parent=5 // pred_fallthru
        _
      %p216 = scmp.lt.s32.totalorder %s23, 2
      // Predicated region
      $region13: #{tpu_custom_call.1} parent=5 // pred_check
        %p217 = pneg %p216
      $region14: #{tpu_custom_call.1} parent=5 // pred_check_branch
        %219 = sbr.rel (%p217) target = $region16
      $region15: #{tpu_custom_call.1} parent=5 // pred_region
        // Predicated region
        $region17: #{tpu_custom_call.1} parent=15 // pred_check
          %p220 = pneg %p57
        $region18: #{tpu_custom_call.1} parent=15 // pred_check_branch
          %222 = sbr.rel (%p220) target = $region20
        $region19: #{tpu_custom_call.1} parent=15 // pred_region
          %s223 = sand.u32 %s47, 1
          %s224 = scalar_lea.sflag [#allocation3], %s223
          %s225 = sand.u32 %s47, 1
          %s226 = smul.addr %s225, 6
          %s227 = scalar_lea.vmem [#allocation2], %s226
          %229 = vsyncadd %s224, 0
          %s230 = smul.addr %s31, 2
          %s231 = smul.addr %s30, 6
          %s232 = sadd.s32 %s230, %s231
          %s233 = scalar_lea.hbm %s0, %s232
          %s234 = sshll.u32 %s233, 4
          %s235 = int_to_ptr.hbm [resolvable:$true] %s234
          %s236 = sshll.u32 %s227, 4
          %s237 = int_to_ptr.vmem [resolvable:$true] %s236
          %242 = dma.hbm_to_vmem [thread:$0]  %s235, 96, %s237, %s224, 32, 32, 2
        $region20: #{tpu_custom_call.1} parent=15 // pred_fallthru
          _
        // Predicated region
        $region21: #{tpu_custom_call.1} parent=15 // pred_check
          %p243 = pneg %p85
        $region22: #{tpu_custom_call.1} parent=15 // pred_check_branch
          %245 = sbr.rel (%p243) target = $region24
        $region23: #{tpu_custom_call.1} parent=15 // pred_region
          %s246 = sand.u32 %s23, 1
          %s247 = scalar_lea.sflag [#allocation6], %s246
          %s248 = sand.u32 %s75, 1
          %s249 = smul.addr %s248, 2
          %s250 = scalar_lea.vmem [#allocation5], %s249
          %252 = vsyncadd %s247, 0
          %s253 = smul.addr %s31, 2
          %s254 = smul.addr %s30, 2
          %s255 = sadd.s32 %s253, %s254
          %s256 = scalar_lea.hbm %s1, %s255
          %s258 = sshll.u32 %s256, 4
          %s259 = int_to_ptr.hbm [resolvable:$true] %s258
          %s260 = sshll.u32 %s250, 4
          %s261 = int_to_ptr.vmem [resolvable:$true] %s260
          %263 = dma.hbm_to_vmem [thread:$0]  %s259, 32, %s261, %s247
        $region24: #{tpu_custom_call.1} parent=15 // pred_fallthru
          _
        // Predicated region
        $region25: #{tpu_custom_call.1} parent=15 // pred_check
          %p264 = pneg %p113
        $region26: #{tpu_custom_call.1} parent=15 // pred_check_branch
          %266 = sbr.rel (%p264) target = $region28
        $region27: #{tpu_custom_call.1} parent=15 // pred_region
          %s267 = sand.u32 %s23, 1
          %s268 = scalar_lea.sflag [#allocation6], %s267
          %s269 = sand.u32 %s103, 1
          %s270 = smul.addr %s269, 2
          %s271 = scalar_lea.vmem [#allocation7], %s270
          %273 = vsyncadd %s268, 0
          %s274 = smul.addr %s31, 2
          %s275 = smul.addr %s30, 2
          %s276 = sadd.s32 %s274, %s275
          %s277 = scalar_lea.hbm %s2, %s276
          %s279 = sshll.u32 %s277, 4
          %s280 = int_to_ptr.hbm [resolvable:$true] %s279
          %s281 = sshll.u32 %s271, 4
          %s282 = int_to_ptr.vmem [resolvable:$true] %s281
          %284 = dma.hbm_to_vmem [thread:$0]  %s280, 32, %s282, %s268
        $region28: #{tpu_custom_call.1} parent=15 // pred_fallthru
          _
        // Predicated region
        $region29: #{tpu_custom_call.1} parent=15 // pred_check
          %p285 = pneg %p141
        $region30: #{tpu_custom_call.1} parent=15 // pred_check_branch
          %287 = sbr.rel (%p285) target = $region32
        $region31: #{tpu_custom_call.1} parent=15 // pred_region
          %s288 = sand.u32 %s23, 1
          %s289 = scalar_lea.sflag [#allocation9], %s288
          %s290 = sand.u32 %s131, 1
          %s291 = smul.addr %s290, 2
          %s292 = scalar_lea.vmem [#allocation8], %s291
          %294 = vsyncadd %s289, 0
          %s295 = smul.addr %s31, 2
          %s296 = smul.addr %s30, 2
          %s297 = sadd.s32 %s295, %s296
          %s298 = scalar_lea.hbm %s3, %s297
          %s300 = sshll.u32 %s298, 4
          %s301 = int_to_ptr.hbm [resolvable:$true] %s300
          %s302 = sshll.u32 %s292, 4
          %s303 = int_to_ptr.vmem [resolvable:$true] %s302
          %305 = dma.hbm_to_vmem [thread:$0]  %s301, 32, %s303, %s289
        $region32: #{tpu_custom_call.1} parent=15 // pred_fallthru
          _
        // Predicated region
        $region33: #{tpu_custom_call.1} parent=15 // pred_check
          %p306 = pneg %p169
        $region34: #{tpu_custom_call.1} parent=15 // pred_check_branch
          %308 = sbr.rel (%p306) target = $region36
        $region35: #{tpu_custom_call.1} parent=15 // pred_region
          %s309 = sand.u32 %s23, 1
          %s310 = scalar_lea.sflag [#allocation9], %s309
          %s311 = sand.u32 %s159, 1
          %s312 = smul.addr %s311, 2
          %s313 = scalar_lea.vmem [#allocation10], %s312
          %315 = vsyncadd %s310, 0
          %s316 = smul.addr %s31, 2
          %s317 = smul.addr %s30, 2
          %s318 = sadd.s32 %s316, %s317
          %s319 = scalar_lea.hbm %s4, %s318
          %s321 = sshll.u32 %s319, 4
          %s322 = int_to_ptr.hbm [resolvable:$true] %s321
          %s323 = sshll.u32 %s313, 4
          %s324 = int_to_ptr.vmem [resolvable:$true] %s323
          %326 = dma.hbm_to_vmem [thread:$0]  %s322, 32, %s324, %s310
        $region36: #{tpu_custom_call.1} parent=15 // pred_fallthru
          _
      $region16: #{tpu_custom_call.1} parent=5 // pred_fallthru
        _
      %p327 = scmp.le.s32.totalorder 1, %s23
      %p328 = scmp.lt.s32.totalorder %s23, 3
      %p329 = pnand %p327, %p328
      %p330 = pneg %p329
      // Predicated region
      $region37: #{tpu_custom_call.1} parent=5 // pred_check
        _
      $region38: #{tpu_custom_call.1} parent=5 // pred_check_branch
        %332 = sbr.rel (%p329) target = $region40
      $region39: #{tpu_custom_call.1} parent=5 // pred_region
        %s333 = ssub.s32 %s23, 1
        %s334 = sand.u32 %s50, 1
        %s335 = scalar_lea.sflag [#allocation3], %s334
        %s336 = sand.u32 %s50, 1
        %s337 = smul.addr %s336, 6
        %s338 = scalar_lea.vmem [#allocation2], %s337
        // Predicated region
        $region41: #{tpu_custom_call.1} parent=39 // pred_check
          %p339 = pneg %p63
        $region42: #{tpu_custom_call.1} parent=39 // pred_check_branch
          %341 = sbr.rel (%p339) target = $region44
        $region43: #{tpu_custom_call.1} parent=39 // pred_region
          %343 = dma.done %s335, 96
        $region44: #{tpu_custom_call.1} parent=39 // pred_fallthru
          _
        %s344 = sand.u32 %s28, 1
        %s345 = scalar_lea.sflag [#allocation6], %s344
        %s346 = sand.u32 %s78, 1
        %s347 = smul.addr %s346, 2
        %s348 = scalar_lea.vmem [#allocation5], %s347
        // Predicated region
        $region45: #{tpu_custom_call.1} parent=39 // pred_check
          %p349 = pneg %p91
        $region46: #{tpu_custom_call.1} parent=39 // pred_check_branch
          %351 = sbr.rel (%p349) target = $region48
        $region47: #{tpu_custom_call.1} parent=39 // pred_region
          %353 = dma.done %s345, 32
        $region48: #{tpu_custom_call.1} parent=39 // pred_fallthru
          _
        %s354 = sand.u32 %s28, 1
        %s355 = scalar_lea.sflag [#allocation6], %s354
        %s356 = sand.u32 %s106, 1
        %s357 = smul.addr %s356, 2
        %s358 = scalar_lea.vmem [#allocation7], %s357
        // Predicated region
        $region49: #{tpu_custom_call.1} parent=39 // pred_check
          %p359 = pneg %p119
        $region50: #{tpu_custom_call.1} parent=39 // pred_check_branch
          %361 = sbr.rel (%p359) target = $region52
        $region51: #{tpu_custom_call.1} parent=39 // pred_region
          %363 = dma.done %s355, 32
        $region52: #{tpu_custom_call.1} parent=39 // pred_fallthru
          _
        %s364 = sand.u32 %s28, 1
        %s365 = scalar_lea.sflag [#allocation9], %s364
        %s366 = sand.u32 %s134, 1
        %s367 = smul.addr %s366, 2
        %s368 = scalar_lea.vmem [#allocation8], %s367
        // Predicated region
        $region53: #{tpu_custom_call.1} parent=39 // pred_check
          %p369 = pneg %p147
        $region54: #{tpu_custom_call.1} parent=39 // pred_check_branch
          %371 = sbr.rel (%p369) target = $region56
        $region55: #{tpu_custom_call.1} parent=39 // pred_region
          %373 = dma.done %s365, 32
        $region56: #{tpu_custom_call.1} parent=39 // pred_fallthru
          _
        %s374 = sand.u32 %s28, 1
        %s375 = scalar_lea.sflag [#allocation9], %s374
        %s376 = sand.u32 %s162, 1
        %s377 = smul.addr %s376, 2
        %s378 = scalar_lea.vmem [#allocation10], %s377
        // Predicated region
        $region57: #{tpu_custom_call.1} parent=39 // pred_check
          %p379 = pneg %p175
        $region58: #{tpu_custom_call.1} parent=39 // pred_check_branch
          %381 = sbr.rel (%p379) target = $region60
        $region59: #{tpu_custom_call.1} parent=39 // pred_region
          %383 = dma.done %s375, 32
        $region60: #{tpu_custom_call.1} parent=39 // pred_fallthru
          _
        %s384 = sand.u32 %s50, 1
        %s385 = scalar_lea.sflag [#allocation3], %s384
        %s386 = sand.u32 %s50, 1
        %s387 = smul.addr %s386, 6
        %s388 = scalar_lea.vmem [#allocation2], %s387
        %p389 = pneg %p63
        %p390 = pneg %p60
        %s391 = sand.u32 %s28, 1
        %s392 = scalar_lea.sflag [#allocation6], %s391
        %s393 = sand.u32 %s78, 1
        %s394 = smul.addr %s393, 2
        %s395 = scalar_lea.vmem [#allocation5], %s394
        %p396 = pneg %p91
        %p397 = pneg %p88
        %s398 = sand.u32 %s28, 1
        %s399 = scalar_lea.sflag [#allocation6], %s398
        %s400 = sand.u32 %s106, 1
        %s401 = smul.addr %s400, 2
        %s402 = scalar_lea.vmem [#allocation7], %s401
        %p403 = pneg %p119
        %p404 = pneg %p116
        %s405 = sand.u32 %s28, 1
        %s406 = scalar_lea.sflag [#allocation9], %s405
        %s407 = sand.u32 %s134, 1
        %s408 = smul.addr %s407, 2
        %s409 = scalar_lea.vmem [#allocation8], %s408
        %p410 = pneg %p147
        %p411 = pneg %p144
        %s412 = sand.u32 %s28, 1
        %s413 = scalar_lea.sflag [#allocation9], %s412
        %s414 = sand.u32 %s162, 1
        %s415 = smul.addr %s414, 2
        %s416 = scalar_lea.vmem [#allocation10], %s415
        %p417 = pneg %p175
        %p418 = pneg %p172
        %p419 = pneg %p201
        %p420 = pneg %p198
        %s421 = sand.u32 %s188, 1
        %s422 = scalar_lea.sflag [#allocation4], %s421
        %s423 = sand.u32 %s188, 1
        %s424 = smul.addr %s423, 16
        %s425 = scalar_lea.vmem [#allocation11], %s424
        %v426 = vld [vmem:[%s338] sm:$0x3]
        %s427 = scalar_lea.vmem %s338, 2 [#allocation2]
        %v428 = vld [vmem:[%s427] sm:$0x3]
        %s429 = scalar_lea.vmem %s338, 4 [#allocation2]
        %v430 = vld [vmem:[%s429] sm:$0x3]
        %v431 = vld [vmem:[%s348] sm:$0x3]
        %v432 = vld [vmem:[%s358] sm:$0x3]
        %v433 = vld [vmem:[%s368] sm:$0x3]
        %v434 = vld [vmem:[%s378] sm:$0x3]
        %v435 = vmul.f32 %v433, %v434
        %v436 = vsub.f32 %v434, %v435
        %p437 = scmp.eq.s32.totalorder %s33, 0
        // Predicated region
        $region61: #{tpu_custom_call.1} parent=39 // pred_check
          %p438 = pneg %p437
        $region62: #{tpu_custom_call.1} parent=39 // pred_check_branch
          %440 = sbr.rel (%p438) target = $region64
        $region63: #{tpu_custom_call.1} parent=39 // pred_region
          %v441 = vlaneseq
          %vm442 = vcmp.ge.s32.totalorder %v441, 0
          %vm443 = vcmp.lt.s32.totalorder %v441, 256
          %vm444 = vmand %vm442, %vm443
          %445 = vst.msk [vmem:[%s425] sm:$0x3] %vm444, 0.0
          %446 = vst.msk [vmem:[%s425 + $0x2] sm:$0x3] %vm444, 0.0
          %447 = vst.msk [vmem:[%s425 + $0x4] sm:$0x3] %vm444, 0.0
          %448 = vst.msk [vmem:[%s425 + $0x6] sm:$0x3] %vm444, 0.0
          %449 = vst.msk [vmem:[%s425 + $0x8] sm:$0x3] %vm444, 0.0
          %450 = vst.msk [vmem:[%s425 + $0xa] sm:$0x3] %vm444, 0.0
          %451 = vst.msk [vmem:[%s425 + $0xc] sm:$0x3] %vm444, 0.0
          %452 = vst.msk [vmem:[%s425 + $0xe] sm:$0x3] %vm444, 0.0
        $region64: #{tpu_custom_call.1} parent=39 // pred_fallthru
          _
        %v453 = vld [vmem:[%s425] sm:$0x3]
        %v454 = vmul.f32 %v426, %v435
        %v455 = vadd.f32 %v454, 0.0
        %v456 = vadd.f32 %v453, %v455
        %v457 = vlaneseq
        %vm458 = vcmp.ge.s32.totalorder %v457, 0
        %vm459 = vcmp.lt.s32.totalorder %v457, 256
        %vm460 = vmand %vm458, %vm459
        %461 = vst.msk [vmem:[%s425] sm:$0x3] %vm460, %v456
        %s462 = scalar_lea.vmem %s425, 2 [#allocation11]
        %v463 = vld [vmem:[%s462] sm:$0x3]
        %v464 = vmul.f32 %v426, %v434
        %v465 = vadd.f32 %v464, 0.0
        %v466 = vadd.f32 %v463, %v465
        %467 = vst.msk [vmem:[%s462] sm:$0x3] %vm460, %v466
        %s468 = scalar_lea.vmem %s425, 4 [#allocation11]
        %v469 = vld [vmem:[%s468] sm:$0x3]
        %v470 = vadd.f32 %v435, 0.0
        %v471 = vadd.f32 %v469, %v470
        %472 = vst.msk [vmem:[%s468] sm:$0x3] %vm460, %v471
        %s473 = scalar_lea.vmem %s425, 6 [#allocation11]
        %v474 = vld [vmem:[%s473] sm:$0x3]
        %v475 = vadd.f32 %v436, 0.0
        %v476 = vadd.f32 %v474, %v475
        %477 = vst.msk [vmem:[%s473] sm:$0x3] %vm460, %v476
        %s478 = scalar_lea.vmem %s425, 8 [#allocation11]
        %v479 = vld [vmem:[%s478] sm:$0x3]
        %v480 = vsub.f32 %v428, %v431
        %v481 = vand.u32 2147483647, %v480
        %v482 = vmul.f32 %v481, %v432
        %v483 = vadd.f32 %v482, 0.0
        %v484 = vadd.f32 %v479, %v483
        %485 = vst.msk [vmem:[%s478] sm:$0x3] %vm460, %v484
        %s486 = scalar_lea.vmem %s425, 10 [#allocation11]
        %v487 = vld [vmem:[%s486] sm:$0x3]
        %v488 = vadd.f32 %v432, 0.0
        %v489 = vadd.f32 %v487, %v488
        %490 = vst.msk [vmem:[%s486] sm:$0x3] %vm460, %v489
        %s491 = scalar_lea.vmem %s425, 12 [#allocation11]
        %v492 = vld [vmem:[%s491] sm:$0x3]
        %v493 = vmul.f32 %v430, %v435
        %v494 = vadd.f32 %v493, 0.0
        %v495 = vadd.f32 %v492, %v494
        %496 = vst.msk [vmem:[%s491] sm:$0x3] %vm460, %v495
        %s497 = scalar_lea.vmem %s425, 14 [#allocation11]
        %v498 = vld [vmem:[%s497] sm:$0x3]
        %v499 = vmul.f32 %v430, %v434
        %v500 = vadd.f32 %v499, 0.0
        %v501 = vadd.f32 %v498, %v500
        %502 = vst.msk [vmem:[%s497] sm:$0x3] %vm460, %v501
        %s503 = sand.u32 %s188, 1
        %s504 = scalar_lea.sflag [#allocation4], %s503
        %s505 = sand.u32 %s188, 1
        %s506 = smul.addr %s505, 16
        %s507 = scalar_lea.vmem [#allocation11], %s506
        // Predicated region
        $region65: #{tpu_custom_call.1} parent=39 // pred_check
          %p508 = pneg %p198
        $region66: #{tpu_custom_call.1} parent=39 // pred_check_branch
          %510 = sbr.rel (%p508) target = $region68
        $region67: #{tpu_custom_call.1} parent=39 // pred_region
          %512 = vsyncadd %s504, 0
          %s513 = smul.addr %s32, 16
          %s514 = scalar_lea.hbm %s5, %s513
          %s515 = sshll.u32 %s507, 4
          %s516 = int_to_ptr.vmem [resolvable:$true] %s515
          %s517 = sshll.u32 %s514, 4
          %s518 = int_to_ptr.hbm [resolvable:$true] %s517
          %523 = dma.vmem_to_hbm [thread:$0]  %s516, 256, %s518, %s504, 32, 32, 2
        $region68: #{tpu_custom_call.1} parent=39 // pred_fallthru
          _
      $region40: #{tpu_custom_call.1} parent=5 // pred_fallthru
        _
      %p524 = scmp.le.s32.totalorder 2, %s23
      // Predicated region
      $region69: #{tpu_custom_call.1} parent=5 // pred_check
        %p525 = pneg %p524
      $region70: #{tpu_custom_call.1} parent=5 // pred_check_branch
        %527 = sbr.rel (%p525) target = $region72
      $region71: #{tpu_custom_call.1} parent=5 // pred_region
        %s528 = ssub.s32 %s23, 2
        // Predicated region
        $region73: #{tpu_custom_call.1} parent=71 // pred_check
          %p529 = pneg %p204
        $region74: #{tpu_custom_call.1} parent=71 // pred_check_branch
          %531 = sbr.rel (%p529) target = $region76
        $region75: #{tpu_custom_call.1} parent=71 // pred_region
          %s532 = sand.u32 %s189, 1
          %s533 = scalar_lea.sflag [#allocation4], %s532
          %s534 = sand.u32 %s189, 1
          %s535 = smul.addr %s534, 16
          %s536 = scalar_lea.vmem [#allocation11], %s535
          %538 = dma.done %s533, 256
        $region76: #{tpu_custom_call.1} parent=71 // pred_fallthru
          _
      $region72: #{tpu_custom_call.1} parent=5 // pred_fallthru
        _
    $region6: #{tpu_custom_call.1} parent=1 // loop_footer
      %s27 = sadd.s32 1, %s23
    $region7: #{tpu_custom_call.1} parent=1 // loop_footer_branch
      %22 = sbr.rel target = $region3
    $region8: #{tpu_custom_call.1} parent=1 // loop_exit
      _
    %539 = vsyncpa [#allocation3], 1
    %s540 = scalar_lea.sflag [#allocation3], 1
    %541 = vsyncpa %s540, 1
    %542 = vsyncpa [#allocation6], 1
    %s543 = scalar_lea.sflag [#allocation6], 1
    %544 = vsyncpa %s543, 1
    %545 = vsyncpa [#allocation9], 1
    %s546 = scalar_lea.sflag [#allocation9], 1
    %547 = vsyncpa %s546, 1
    %548 = vsyncpa [#allocation4], 1
    %s549 = scalar_lea.sflag [#allocation4], 1
    %550 = vsyncpa %s549, 1

</llo_original>
